<compile_context>
chip_gen: v6e
topology: v6e:2x2x1
jax: 0.10.0
libtpu: 0.0.40
codegen_flags: <defaults>
</compile_context>

<pallas_src>
import jax
import jax.numpy as jnp
from jax.experimental import pallas as pl
from jax.experimental.pallas import tpu as pltpu


def _channel_attn_kernel(x_ref, w_ref, b_ref, out_ref, atten_ref):
    # x_ref: (TB, N, D); w_ref: (D, D) (PyTorch Linear layout: out x in);
    # b_ref: (1, D); out_ref: (TB, N-1); atten_ref: (TB, N-1).
    x = x_ref[...].astype(jnp.float32)                # (TB, N, D)
    x0 = x[:, 0:1, :]                                  # (TB, 1, D)    query = token 0
    xr = x[:, 1:, :]                                   # (TB, N-1, D)  keys / values

    # scores[b, j] = <x[b, 0], x[b, j+1]>  — VPU mul + XLU lane reduce over D.
    scores = jnp.sum(xr * x0, axis=-1)                 # (TB, N-1)

    # Numerically stable softmax over the key axis, f32 throughout.
    m = jnp.max(scores, axis=-1, keepdims=True)
    e = jnp.exp(scores - m)
    denom = jnp.sum(e, axis=-1, keepdims=True)
    atten = e * pl.reciprocal(denom, approx=False)     # exact: outputs checked at 1e-5

    # mean_d(Linear(x)[b, n, d]) == x[b, n, :] . mean_rows(W) + mean(bias)
    w_mean = jnp.mean(w_ref[...].astype(jnp.float32), axis=0, keepdims=True)   # (1, D)
    b_mean = jnp.mean(b_ref[...].astype(jnp.float32), axis=-1, keepdims=True)  # (1, 1)
    v_mean = jnp.sum(xr * w_mean, axis=-1) + b_mean                            # (TB, N-1)

    out_ref[...] = (atten * v_mean).astype(out_ref.dtype)
    atten_ref[...] = atten.astype(atten_ref.dtype)


def my_channel_attention(x, w, b, *, batch_tile=None):
    """x: (B, N, D); w: (D, D) torch Linear weight (out, in); b: (D,).

    Returns (out: (B, N-1), atten: (B, 1, N-1)), matching the PyTorch forward.
    """
    B, N, D = x.shape
    if batch_tile is None:
        batch_tile = B          # tiny shapes: a single grid step for the whole batch
    assert B % batch_tile == 0
    # For batch_tile < B the sublane dim of the output blocks must be 8-aligned.
    assert batch_tile == B or batch_tile % 8 == 0
    grid = (B // batch_tile,)

    b2 = b.reshape(1, D)        # 2-D, lane-major bias for a clean VMEM layout

    itemsize = x.dtype.itemsize
    cost = pl.CostEstimate(
        flops=4 * B * (N - 1) * D + D * D + 8 * B * (N - 1),
        transcendentals=B * (N - 1),
        bytes_accessed=(x.size + w.size + b.size + 2 * B * (N - 1)) * itemsize,
    )

    out2d, atten2d = pl.pallas_call(
        _channel_attn_kernel,
        out_shape=(
            jax.ShapeDtypeStruct((B, N - 1), x.dtype),
            jax.ShapeDtypeStruct((B, N - 1), x.dtype),
        ),
        grid_spec=pltpu.PrefetchScalarGridSpec(
            num_scalar_prefetch=0,
            grid=grid,
            in_specs=[
                pl.BlockSpec((batch_tile, N, D), lambda i: (i, 0, 0)),
                pl.BlockSpec((D, D), lambda i: (0, 0)),
                pl.BlockSpec((1, D), lambda i: (0, 0)),
            ],
            out_specs=(
                pl.BlockSpec((batch_tile, N - 1), lambda i: (i, 0)),
                pl.BlockSpec((batch_tile, N - 1), lambda i: (i, 0)),
            ),
        ),
        compiler_params=pltpu.CompilerParams(
            dimension_semantics=("parallel",),   # batch tiles are independent (v7x megacore)
        ),
        cost_estimate=cost,
    )(x, w, b2)

    # Restore the module's (B, 1, N-1) atten shape — free layout plumbing.
    return out2d, atten2d[:, None, :]


def reference(x, w, b):
    """Pure-JAX mirror of the PyTorch forward (unsimplified path)."""
    v = x @ w.T + b                                                  # (B, N, D)
    scores = jnp.einsum("bd,bnd->bn", x[:, 0], x[:, 1:])             # (B, N-1)
    atten = jax.nn.softmax(scores, axis=-1)[:, None, :]              # (B, 1, N-1)
    out = (v[:, 1:] * jnp.swapaxes(atten, -2, -1)).mean(-1)          # (B, N-1)
    return out, atten


if __name__ == "__main__":
    key = jax.random.PRNGKey(0)
    B, N, D = 2, 8, 32
    kx, kw, kb = jax.random.split(key, 3)
    x = jax.random.normal(kx, (B, N, D), dtype=jnp.float32)
    # Deterministic init of the Linear(dim, dim) parameters (PyTorch layout (out, in)).
    w = jax.random.normal(kw, (D, D), dtype=jnp.float32) * 0.02
    b = jax.random.normal(kb, (D,), dtype=jnp.float32) * 0.01

    out, atten = my_channel_attention(x, w, b)
    jax.block_until_ready((out, atten))

    ref_out, ref_atten = reference(x, w, b)
    assert out.shape == (B, N - 1)
    assert atten.shape == (B, 1, N - 1)
    assert jnp.allclose(atten, ref_atten, atol=1e-5, rtol=1e-5)
    assert jnp.allclose(out, ref_out, atol=1e-5, rtol=1e-5)

    print("KERNEL_OK")
</pallas_src>

<mosaic_0001>
module attributes {stable_mosaic.version = 11 : i64} {
  func.func @_channel_attn_kernel(%arg0: i32, %arg1: memref<2x8x32xf32, #tpu.memory_space<vmem>>, %arg2: memref<32x32xf32, #tpu.memory_space<vmem>>, %arg3: memref<1x32xf32, #tpu.memory_space<vmem>>, %arg4: memref<2x7xf32, #tpu.memory_space<vmem>>, %arg5: memref<2x7xf32, #tpu.memory_space<vmem>>) attributes {dimension_semantics = [#tpu.dimension_semantics<parallel>], iteration_bounds = array<i64: 1>, scalar_prefetch = 0 : i64, scratch_operands = 0 : i64, tpu.core_type = #tpu.core_type<tc>, window_params = [{transform_indices = @transform_0, window_bounds = array<i64: 2, 8, 32>}, {pipeline_mode = #tpu.pipeline_mode<synchronous>, transform_indices = @transform_1, window_bounds = array<i64: 32, 32>}, {pipeline_mode = #tpu.pipeline_mode<synchronous>, transform_indices = @transform_2, window_bounds = array<i64: 1, 32>}, {transform_indices = @transform_3, window_bounds = array<i64: 2, 7>}, {transform_indices = @transform_4, window_bounds = array<i64: 2, 7>}]} {
    %c0 = arith.constant 0 : index
    %c0_0 = arith.constant 0 : index
    %c0_1 = arith.constant 0 : index
    %0 = vector.load %arg1[%c0, %c0_0, %c0_1] : memref<2x8x32xf32, #tpu.memory_space<vmem>>, vector<2x8x32xf32>
    %1 = vector.extract_strided_slice %0 {offsets = [0, 0, 0], sizes = [2, 1, 32], strides = [1, 1, 1]} : vector<2x8x32xf32> to vector<2x1x32xf32>
    %2 = vector.extract_strided_slice %0 {offsets = [0, 1, 0], sizes = [2, 7, 32], strides = [1, 1, 1]} : vector<2x8x32xf32> to vector<2x7x32xf32>
    %3 = vector.broadcast %1 : vector<2x1x32xf32> to vector<2x7x32xf32>
    %4 = arith.mulf %2, %3 : vector<2x7x32xf32>
    %cst = arith.constant dense<0.000000e+00> : vector<2x7xf32>
    %5 = vector.multi_reduction <add>, %4, %cst [2] : vector<2x7x32xf32> to vector<2x7xf32>
    %cst_2 = arith.constant dense<0xFF800000> : vector<2xf32>
    %6 = vector.multi_reduction <maximumf>, %5, %cst_2 [1] : vector<2x7xf32> to vector<2xf32>
    %7 = vector.shape_cast %6 : vector<2xf32> to vector<2x1xf32>
    %8 = vector.broadcast %7 : vector<2x1xf32> to vector<2x7xf32>
    %9 = arith.subf %5, %8 : vector<2x7xf32>
    %10 = math.exp %9 : vector<2x7xf32>
    %cst_3 = arith.constant dense<0.000000e+00> : vector<2xf32>
    %11 = vector.multi_reduction <add>, %10, %cst_3 [1] : vector<2x7xf32> to vector<2xf32>
    %12 = vector.shape_cast %11 : vector<2xf32> to vector<2x1xf32>
    %13 = tpu.reciprocal %12 : vector<2x1xf32> -> vector<2x1xf32>
    %14 = vector.broadcast %13 : vector<2x1xf32> to vector<2x7xf32>
    %15 = arith.mulf %10, %14 : vector<2x7xf32>
    %c0_4 = arith.constant 0 : index
    %c0_5 = arith.constant 0 : index
    %16 = vector.load %arg2[%c0_4, %c0_5] : memref<32x32xf32, #tpu.memory_space<vmem>>, vector<32x32xf32>
    %cst_6 = arith.constant dense<0.000000e+00> : vector<32xf32>
    %17 = vector.multi_reduction <add>, %16, %cst_6 [0] : vector<32x32xf32> to vector<32xf32>
    %18 = vector.shape_cast %17 : vector<32xf32> to vector<1x32xf32>
    %cst_7 = arith.constant 3.200000e+01 : f32
    %19 = vector.broadcast %cst_7 : f32 to vector<1x32xf32>
    %20 = arith.divf %18, %19 : vector<1x32xf32>
    %c0_8 = arith.constant 0 : index
    %c0_9 = arith.constant 0 : index
    %21 = vector.load %arg3[%c0_8, %c0_9] : memref<1x32xf32, #tpu.memory_space<vmem>>, vector<1x32xf32>
    %cst_10 = arith.constant dense<0.000000e+00> : vector<1xf32>
    %22 = vector.multi_reduction <add>, %21, %cst_10 [1] : vector<1x32xf32> to vector<1xf32>
    %23 = vector.shape_cast %22 : vector<1xf32> to vector<1x1xf32>
    %cst_11 = arith.constant 3.200000e+01 : f32
    %24 = vector.broadcast %cst_11 : f32 to vector<1x1xf32>
    %25 = arith.divf %23, %24 : vector<1x1xf32>
    %26 = vector.shape_cast %20 : vector<1x32xf32> to vector<1x1x32xf32>
    %27 = vector.broadcast %26 : vector<1x1x32xf32> to vector<2x7x32xf32>
    %28 = arith.mulf %2, %27 : vector<2x7x32xf32>
    %cst_12 = arith.constant dense<0.000000e+00> : vector<2x7xf32>
    %29 = vector.multi_reduction <add>, %28, %cst_12 [2] : vector<2x7x32xf32> to vector<2x7xf32>
    %30 = vector.broadcast %25 : vector<1x1xf32> to vector<2x7xf32>
    %31 = arith.addf %29, %30 : vector<2x7xf32>
    %32 = arith.mulf %15, %31 : vector<2x7xf32>
    %c0_13 = arith.constant 0 : index
    %c0_14 = arith.constant 0 : index
    %33 = vector.load %arg4[%c0_13, %c0_14] : memref<2x7xf32, #tpu.memory_space<vmem>>, vector<2x7xf32>
    tpu.vector_store %arg4[%c0_13, %c0_14], %32 {strides = array<i32>} : memref<2x7xf32, #tpu.memory_space<vmem>>, vector<2x7xf32>,
    %c0_15 = arith.constant 0 : index
    %c0_16 = arith.constant 0 : index
    %34 = vector.load %arg5[%c0_15, %c0_16] : memref<2x7xf32, #tpu.memory_space<vmem>>, vector<2x7xf32>
    tpu.vector_store %arg5[%c0_15, %c0_16], %15 {strides = array<i32>} : memref<2x7xf32, #tpu.memory_space<vmem>>, vector<2x7xf32>,
    return
  }
  func.func @transform_0(%arg0: i32) -> (i32, i32, i32) {
    %c0_i32 = arith.constant 0 : i32
    %c0_i32_0 = arith.constant 0 : i32
    %c0_i32_1 = arith.constant 0 : i32
    return %arg0, %c0_i32, %c0_i32_0 : i32, i32, i32
  }
  func.func @transform_1(%arg0: i32) -> (i32, i32) {
    %c0_i32 = arith.constant 0 : i32
    %c0_i32_0 = arith.constant 0 : i32
    %c0_i32_1 = arith.constant 0 : i32
    return %c0_i32, %c0_i32_0 : i32, i32
  }
  func.func @transform_2(%arg0: i32) -> (i32, i32) {
    %c0_i32 = arith.constant 0 : i32
    %c0_i32_0 = arith.constant 0 : i32
    %c0_i32_1 = arith.constant 0 : i32
    return %c0_i32, %c0_i32_0 : i32, i32
  }
  func.func @transform_3(%arg0: i32) -> (i32, i32) {
    %c0_i32 = arith.constant 0 : i32
    %c0_i32_0 = arith.constant 0 : i32
    return %arg0, %c0_i32 : i32, i32
  }
  func.func @transform_4(%arg0: i32) -> (i32, i32) {
    %c0_i32 = arith.constant 0 : i32
    %c0_i32_0 = arith.constant 0 : i32
    return %arg0, %c0_i32 : i32, i32
  }
}

</mosaic_0001>

<llo_original>
// kernel: tpu_custom_call.1
$region0: #{tpu_custom_call.1}
  #allocation0 [shape = 'u32[]', space=smem, size = 0x4, offset = 0x4, fixed_abs, tag = 'smem constant byte address 0x4 - core index']
  #allocation1 [shape = 'u32[144,128]{1,0:T(1,128)}', space=vmem, size = 0x12000, scoped, tag = 'internal scratch']
  %s0 = inlined_call_operand.hbm [shape: f32[2,8,32], index: 0, kind: input, shape index: {}]
  %s1 = inlined_call_operand.hbm [shape: f32[32,32], index: 1, kind: input, shape index: {}]
  %s2 = inlined_call_operand.vmem [shape: f32[1,32], index: 2, kind: input, shape index: {}]
  %s3 = inlined_call_operand.hbm [shape: f32[2,7], index: 3, kind: output, shape index: {0}]
  %s4 = inlined_call_operand.hbm [shape: f32[2,7], index: 4, kind: output, shape index: {1}]
  %5 = xla_tuple %s3, %s4
  %s6 = sld [smem:[#allocation0]]
  $region38: #{tpu_custom_call.1} parent=0
    _
  %s8 = ssub.s32 1, %s6
  %s9 = scalar_select 0, %s8, %s6
  $region1: #{tpu_custom_call.1} parent=0
    #allocation2 [shape = 'u8[8192]{0}', space=vmem, size = 0x2000, scoped, tag = 'input window, operand 0, single buffered']
    #allocation3 [shape = 's32[1]{0}', space=sflag, size = 0x4, scoped, tag = 'scoped memory for tpu_custom_call.1']
    #allocation4 [shape = 's32[1]{0}', space=sflag, size = 0x4, scoped, tag = 'scoped memory for tpu_custom_call.1']
    #allocation5 [shape = 'u8[16384]{0}', space=vmem, size = 0x4000, scoped, tag = 'input window, operand 1, single buffered']
    #allocation6 [shape = 's32[1]{0}', space=sflag, size = 0x4, scoped, tag = 'scoped memory for tpu_custom_call.1']
    #allocation7 [shape = 'u8[1024]{0}', space=vmem, size = 0x400, scoped, tag = 'output window, operand 0, single buffered']
    #allocation8 [shape = 'u8[1024]{0}', space=vmem, size = 0x400, scoped, tag = 'output window, operand 1, single buffered']
    #allocation9 [shape = 's32[1]{0}', space=sflag, size = 0x4, scoped, tag = 'scoped memory for tpu_custom_call.1']
    %10 = vsyncpa [#allocation3], 0
    %11 = vsyncpa [#allocation6], 0
    %12 = vsyncpa [#allocation4], 0
    %13 = vsyncpa [#allocation9], 0
    // Predicated region
    $region2: #{tpu_custom_call.1} parent=1 // pred_check
      _
    $region3: #{tpu_custom_call.1} parent=1 // pred_check_branch
      %15 = sbr.rel (0) target = $region5
    $region4: #{tpu_custom_call.1} parent=1 // pred_region
      %s17 = ssub.s32 256, 256
      %18 = vsyncadd [#allocation3], %s17
      %s19 = sshll.u32 [#allocation2], 4
      %s20 = int_to_ptr.vmem [resolvable:$true] %s19
      %25 = dma.hbm_to_vmem [thread:$0]  %s0, 256, %s20, [#allocation3], 128, 128, 8
    $region5: #{tpu_custom_call.1} parent=1 // pred_fallthru
      _
    // Predicated region
    $region6: #{tpu_custom_call.1} parent=1 // pred_check
      _
    $region7: #{tpu_custom_call.1} parent=1 // pred_check_branch
      %27 = sbr.rel (0) target = $region9
    $region8: #{tpu_custom_call.1} parent=1 // pred_region
      %s29 = ssub.s32 512, 512
      %30 = vsyncadd [#allocation6], %s29
      %s31 = sshll.u32 [#allocation5], 4
      %s32 = int_to_ptr.vmem [resolvable:$true] %s31
      %37 = dma.hbm_to_vmem [thread:$0]  %s1, 512, %s32, [#allocation6], 128, 128, 8
    $region9: #{tpu_custom_call.1} parent=1 // pred_fallthru
      _
    // Predicated region
    $region10: #{tpu_custom_call.1} parent=1 // pred_check
      _
    $region11: #{tpu_custom_call.1} parent=1 // pred_check_branch
      %39 = sbr.rel (0) target = $region13
    $region12: #{tpu_custom_call.1} parent=1 // pred_region
      _
    $region13: #{tpu_custom_call.1} parent=1 // pred_fallthru
      _
    // Predicated region
    $region14: #{tpu_custom_call.1} parent=1 // pred_check
      _
    $region15: #{tpu_custom_call.1} parent=1 // pred_check_branch
      %41 = sbr.rel (0) target = $region17
    $region16: #{tpu_custom_call.1} parent=1 // pred_region
      %42 = dma.done [#allocation3], 256
    $region17: #{tpu_custom_call.1} parent=1 // pred_fallthru
      _
    // Predicated region
    $region18: #{tpu_custom_call.1} parent=1 // pred_check
      _
    $region19: #{tpu_custom_call.1} parent=1 // pred_check_branch
      %44 = sbr.rel (0) target = $region21
    $region20: #{tpu_custom_call.1} parent=1 // pred_region
      %45 = dma.done [#allocation6], 512
    $region21: #{tpu_custom_call.1} parent=1 // pred_fallthru
      _
    %v46 = vld [vmem:[#allocation2] sm:$0xff]
    %v47 = vld [vmem:[#allocation2 + $0x8] sm:$0xff]
    %v48 = vlaneseq
    %v49 = vshrl.u32 %v48, 7
    %v50 = vsub.s32 0, %v49
    %v51 = vrot.slane %v46, %v50
    %v52 = vlaneseq
    %v53 = vshrl.u32 %v52, 7
    %v54 = vsub.s32 0, %v53
    %v55 = vrot.slane %v47, %v54
    %v56 = vmul.f32 %v46, %v51
    %v57 = vmul.f32 %v47, %v55
    %vm58 = vcmask 261121
    %v59 = vsel %vm58, %v56, 0.0
    %60 = vadd.xlane.f32.xlu0 %v59
    %v61 = vpop.xlane.xlu0 %60
    %v62 = vsel %vm58, %v57, 0.0
    %63 = vadd.xlane.f32.xlu0 %v62
    %v64 = vpop.xlane.xlu0 %63
    %v67 = vlaneseq
    %v68 = vand.u32 %v67, 127
    %v69 = vlaneseq
    %v70 = vshrl.u32 %v69, 7
    %v71 = vsub.s32 %v68, %v70
    %v72 = vrot.slane %v61, %v71
    %v73 = vlaneseq
    %v74 = vshrl.u32 %v73, 7
    %v75 = vsub.s32 %v68, %v74
    %v76 = vrot.slane %v64, %v75
    %vm77 = vcmask 1041409
    %v78 = vsel %vm77, %v76, %v72
    %vm80 = vcmask 58376
    %v81 = vsel %vm80, %v78, -inf
    %82 = vmax.xlane.f32.xlu0 %v81
    %v83 = vpop.xlane.xlu0 %82
    %v85 = vlaneseq
    %v86 = vshrl.u32 %v85, 7
    %v87 = vsub.s32 0, %v86
    %v88 = vrot.slane %v83, %v87
    %v89 = vlaneseq
    %v90 = vshrl.u32 %v89, 7
    %v91 = vsub.s32 1, %v90
    %v92 = vrot.slane %v83, %v91
    %v95 = vsub.f32 %v61, %v88
    %v96 = vsub.f32 %v64, %v92
    %v97 = vmul.f32 %v95, 1.442695
    %v98 = vpow.pop %v97
    %v99 = vmul.f32 %v96, 1.442695
    %v100 = vpow.pop %v99
    %103 = vset.pattern.permute.xlu0 0
    %104 = vperm.xlu0 %103, %v98
    %v105 = vpop.permute.xlu0 %104
    %106 = vset.pattern.permute.xlu0 0
    %107 = vperm.xlu0 %106, %v100
    %v108 = vpop.permute.xlu0 %107
    %v109 = vadd.s32 %v68, 1
    %v110 = vlaneseq
    %v111 = vshrl.u32 %v110, 7
    %v112 = vsub.s32 %v109, %v111
    %v113 = vrot.slane %v105, %v112
    %v114 = vlaneseq
    %v115 = vshrl.u32 %v114, 7
    %v116 = vsub.s32 %v109, %v115
    %v117 = vrot.slane %v108, %v116
    %v118 = vsel %vm77, %v117, %v113
    %vm120 = vcmask 50176
    %v121 = vsel %vm120, %v118, 0.0
    %122 = vadd.xlane.f32.xlu0 %v121
    %v123 = vpop.xlane.xlu0 %122
    %v124 = vrcp.pop %v123
    %v126 = vlaneseq
    %v127 = vshrl.u32 %v126, 7
    %v128 = vsub.s32 0, %v127
    %v129 = vrot.slane %v124, %v128
    %v130 = vlaneseq
    %v131 = vshrl.u32 %v130, 7
    %v132 = vsub.s32 1, %v131
    %v133 = vrot.slane %v124, %v132
    %v136 = vmul.f32 %v98, %v129
    %v137 = vmul.f32 %v100, %v133
    %v138 = vld [vmem:[#allocation5] sm:$0xff]
    %v139 = vld [vmem:[#allocation5 + $0x8] sm:$0xff]
    %v140 = vld [vmem:[#allocation5 + $0x10] sm:$0xff]
    %v141 = vld [vmem:[#allocation5 + $0x18] sm:$0xff]
    %vm142 = vcmask 261120
    %v143 = vsel %vm142, %v138, 0.0
    %v144 = vsel %vm142, %v139, 0.0
    %v145 = vadd.f32 %v143, %v144
    %v146 = vsel %vm142, %v140, 0.0
    %v147 = vadd.f32 %v145, %v146
    %v148 = vsel %vm142, %v141, 0.0
    %v149 = vadd.f32 %v147, %v148
    %v150 = vrot.slane %v149, 4
    %v151 = vadd.f32 %v149, %v150
    %v152 = vrot.slane %v151, 2
    %v153 = vadd.f32 %v151, %v152
    %v154 = vrot.slane %v153, 1
    %v155 = vadd.f32 %v153, %v154
    %v156 = vrcp.pop 32.0
    %v157 = vmul.f32 %v155, %v156
    %v158 = vld [vmem:[%s2] sm:$0x1]
    %vm159 = vcmask 253952
    %v160 = vsel %vm159, %v158, 0.0
    %161 = vadd.xlane.f32.xlu0 %v160
    %v162 = vpop.xlane.xlu0 %161
    %v163 = vmul.f32 %v162, %v156
    %v164 = vmul.f32 %v46, %v157
    %v165 = vmul.f32 %v47, %v157
    %v166 = vsel %vm58, %v164, 0.0
    %167 = vadd.xlane.f32.xlu0 %v166
    %v168 = vpop.xlane.xlu0 %167
    %v169 = vsel %vm58, %v165, 0.0
    %170 = vadd.xlane.f32.xlu0 %v169
    %v171 = vpop.xlane.xlu0 %170
    %v172 = vlaneseq
    %v173 = vshrl.u32 %v172, 7
    %v174 = vsub.s32 0, %v173
    %v175 = vrot.slane %v163, %v174
    %v176 = vadd.f32 %v168, %v175
    %v177 = vadd.f32 %v171, %v175
    %v178 = vmul.f32 %v136, %v176
    %v179 = vmul.f32 %v137, %v177
    %182 = vset.pattern.permute.xlu0 0
    %183 = vperm.xlu0 %182, %v178
    %v184 = vpop.permute.xlu0 %183
    %185 = vset.pattern.permute.xlu0 0
    %186 = vperm.xlu0 %185, %v179
    %v187 = vpop.permute.xlu0 %186
    %v188 = vlaneseq
    %v189 = vshrl.u32 %v188, 7
    %v190 = vsub.s32 %v109, %v189
    %v191 = vrot.slane %v184, %v190
    %v192 = vlaneseq
    %v193 = vshrl.u32 %v192, 7
    %v194 = vsub.s32 %v109, %v193
    %v195 = vrot.slane %v187, %v194
    %vm196 = vcmask 1042434
    %v197 = vsel %vm196, %v195, %v191
    %vm199 = vcmask 51201
    %200 = vst.msk [vmem:[#allocation7 - $0x1] sm:$0x6] %vm199, %v197
    %203 = vset.pattern.permute.xlu0 0
    %204 = vperm.xlu0 %203, %v136
    %v205 = vpop.permute.xlu0 %204
    %206 = vset.pattern.permute.xlu0 0
    %207 = vperm.xlu0 %206, %v137
    %v208 = vpop.permute.xlu0 %207
    %v209 = vlaneseq
    %v210 = vshrl.u32 %v209, 7
    %v211 = vsub.s32 %v109, %v210
    %v212 = vrot.slane %v205, %v211
    %v213 = vlaneseq
    %v214 = vshrl.u32 %v213, 7
    %v215 = vsub.s32 %v109, %v214
    %v216 = vrot.slane %v208, %v215
    %v217 = vsel %vm196, %v216, %v212
    %219 = vst.msk [vmem:[#allocation8 - $0x1] sm:$0x6] %vm199, %v217
    // Predicated region
    $region22: #{tpu_custom_call.1} parent=1 // pred_check
      _
    $region23: #{tpu_custom_call.1} parent=1 // pred_check_branch
      %221 = sbr.rel (0) target = $region25
    $region24: #{tpu_custom_call.1} parent=1 // pred_region
      %s223 = ssub.s32 32, 32
      %224 = vsyncadd [#allocation4], %s223
      %s226 = sshll.u32 [#allocation7], 4
      %s227 = int_to_ptr.vmem [resolvable:$true] %s226
      %229 = dma.vmem_to_hbm [thread:$0]  %s227, 32, %s3, [#allocation4]
    $region25: #{tpu_custom_call.1} parent=1 // pred_fallthru
      _
    // Predicated region
    $region26: #{tpu_custom_call.1} parent=1 // pred_check
      _
    $region27: #{tpu_custom_call.1} parent=1 // pred_check_branch
      %231 = sbr.rel (0) target = $region29
    $region28: #{tpu_custom_call.1} parent=1 // pred_region
      %s233 = ssub.s32 32, 32
      %234 = vsyncadd [#allocation9], %s233
      %s236 = sshll.u32 [#allocation8], 4
      %s237 = int_to_ptr.vmem [resolvable:$true] %s236
      %239 = dma.vmem_to_hbm [thread:$0]  %s237, 32, %s4, [#allocation9]
    $region29: #{tpu_custom_call.1} parent=1 // pred_fallthru
      _
    // Predicated region
    $region30: #{tpu_custom_call.1} parent=1 // pred_check
      _
    $region31: #{tpu_custom_call.1} parent=1 // pred_check_branch
      %241 = sbr.rel (0) target = $region33
    $region32: #{tpu_custom_call.1} parent=1 // pred_region
      %242 = dma.done [#allocation4], 32
    $region33: #{tpu_custom_call.1} parent=1 // pred_fallthru
      _
    // Predicated region
    $region34: #{tpu_custom_call.1} parent=1 // pred_check
      _
    $region35: #{tpu_custom_call.1} parent=1 // pred_check_branch
      %244 = sbr.rel (0) target = $region37
    $region36: #{tpu_custom_call.1} parent=1 // pred_region
      %245 = dma.done [#allocation9], 32
    $region37: #{tpu_custom_call.1} parent=1 // pred_fallthru
      _
    %246 = vsyncpa [#allocation3], 1
    %247 = vsyncpa [#allocation6], 1
    %248 = vsyncpa [#allocation4], 1
    %249 = vsyncpa [#allocation9], 1

</llo_original>
